<compile_context>
chip_gen: v7x
topology: tpu7x:2x2x1
jax: 0.10.0
libtpu: 0.0.40
codegen_flags: <defaults>
</compile_context>

<pallas_src>
import functools

import jax
import jax.numpy as jnp
from jax import lax
from jax.experimental import pallas as pl
from jax.experimental.pallas import tpu as pltpu

MARGIN = 2.0
_PAIRWISE_EPS = 1e-6            # F.pairwise_distance default eps
_MAX_BLOCK_ROWS = 4096          # hard cap on rows per tile
_TARGET_BLOCK_VMEM = 2 << 20    # ~2 MiB of (lane-padded) VMEM per input block


def _round_up(x, m):
    return ((x + m - 1) // m) * m


def _contrastive_loss_kernel(o1_ref, o2_ref, t_ref, loss_ref, *,
                             batch, nb, npc, margin, eps, need_mask):
    c = pl.program_id(0)          # TensorCore / partial-sum slot
    i = pl.program_id(1)          # block index within this core's slice

    @pl.when(i == 0)
    def _init():
        loss_ref[...] = jnp.zeros_like(loss_ref)

    # Cast once per tile (v5e VPU/EUP have no native bf16).
    o1 = o1_ref[...].astype(jnp.float32)          # (TB, D)
    o2 = o2_ref[...].astype(jnp.float32)          # (TB, D)
    t = t_ref[...].astype(jnp.float32)            # (1, TB), lane-dense

    diff = o1 - o2 + eps                                       # (TB, D)
    dist_sq = jnp.sum(diff * diff, axis=-1, keepdims=True)     # (TB, 1)
    dist = jnp.sqrt(dist_sq)                                   # euclidean dist
    # torch.pow(dist, 2): keep the sqrt->square roundtrip for bit parity.
    d2 = dist * dist
    hinge = jnp.maximum(margin - dist, 0.0)
    w = hinge * hinge - d2                                     # (TB, 1)

    if need_mask:
        # Ragged last tile and/or phantom block (its DMA index was clamped);
        # zero those rows with true selects so garbage/NaN cannot propagate.
        tb = o1_ref.shape[0]
        row0 = (c * npc + i) * tb            # UNclamped global row offset
        col_idx = lax.broadcasted_iota(jnp.int32, (tb, 1), 0) + row0
        lane_idx = lax.broadcasted_iota(jnp.int32, (1, tb), 1) + row0
        d2 = jnp.where(col_idx < batch, d2, 0.0)
        w = jnp.where(col_idx < batch, w, 0.0)
        t = jnp.where(lane_idx < batch, t, 0.0)

    # sum_r[(1-t) d^2 + t h^2] = sum_r d^2 + t . (h^2 - d^2).  The tiny
    # (1,TB)x(TB,1) dot rides the otherwise idle MXU and avoids a
    # lane<->sublane relayout of the lane-dense target.
    cross = jnp.dot(t, w, preferred_element_type=jnp.float32,
                    precision=lax.Precision.HIGHEST)           # (1, 1)
    tile_sum = jnp.sum(d2) + jnp.sum(cross)

    # Per-core running partial, broadcast over the lane-aligned (1,128) tile.
    # (Sequential f32 accumulation is fine at 1e-5 for realistic batch sizes;
    #  for B in the many millions switch to a per-core partial vector.)
    loss_ref[...] = loss_ref[...] + tile_sum


def _pick_block_rows(B, D, itemsize):
    """Largest lane-friendly row tile, sized by (lane-padded) bytes."""
    padded_d = _round_up(max(D, 1), 128)
    tb = _TARGET_BLOCK_VMEM // (padded_d * itemsize)
    tb = min(tb, _MAX_BLOCK_ROWS)
    # Multiple of 128: covers f32/bf16/int8 sublane packs and keeps the
    # lane-dense (1, TB) target block (8,128)-legal when the batch is tiled.
    tb = max(128, (tb // 128) * 128)
    if tb >= B:
        return B                      # single full-extent block
    return tb


def contrastive_loss(output1, output2, target, *, margin=MARGIN,
                     block_rows=None):
    """output1/output2: (B, D); target: (B,) or (B, 1). Returns scalar f32."""
    B, D = output1.shape
    assert output2.shape == (B, D)
    assert target.size == B

    itemsize = jnp.dtype(output1.dtype).itemsize
    if block_rows is None:
        TB = _pick_block_rows(B, D, itemsize)
    else:
        TB = int(block_rows)
        if TB >= B:
            TB = B
        else:
            TB = max(128, _round_up(TB, 128))
            if TB >= B:
                TB = B

    nb = pl.cdiv(B, TB)                      # total batch tiles
    num_cores = 2 if nb >= 2 else 1          # v7x: one slice per TensorCore
    npc = pl.cdiv(nb, num_cores)             # tiles per core
    need_mask = (B % TB != 0) or (num_cores * npc != nb)

    # Lane-dense target: contiguous DMA, ~32*TB bytes per buffer instead of
    # the ~512*TB bytes a (TB, 1) column tile would occupy in VMEM.
    t_row = jnp.reshape(target, (1, B))

    def in_map(c, i):                        # clamp phantom blocks in-bounds
        return (jnp.minimum(c * npc + i, nb - 1), 0)

    def t_map(c, i):
        return (0, jnp.minimum(c * npc + i, nb - 1))

    def out_map(c, i):                       # per-core partial-sum tile
        return (0, c)

    # --- VMEM accounting on padded shapes / real dtypes ---------------------
    t_itemsize = jnp.dtype(t_row.dtype).itemsize
    sub_in = 8 * max(1, 4 // itemsize)       # 8 (f32) / 16 (bf16) / 32 (int8)
    sub_t = 8 * max(1, 4 // t_itemsize)
    pad_rows = _round_up(TB, sub_in)
    pad_d = _round_up(D, 128)
    in_block = pad_rows * pad_d * itemsize
    t_block = sub_t * _round_up(TB, 128) * t_itemsize
    out_block = 8 * _round_up(128 * num_cores, 128) * 4
    # 2 inputs x 2 pipeline buffers + 2 target buffers + output tile, plus
    # headroom for Mosaic-materialized f32 intermediates (diff, diff^2 and the
    # sublane-padded (TB,1) per-row chain) and misc compiler scratch.
    vmem_needed = (2 * 2 * in_block + 2 * t_block + out_block
                   + 4 * pad_rows * pad_d * 4 + 6 * pad_rows * 512
                   + (1 << 20))
    cap = 48 << 20                           # safe on v7x (64 MiB physical)
    try:
        vmem_cap = getattr(pltpu.get_tpu_info(), "vmem_capacity_bytes", None)
        if vmem_cap:
            cap = int(0.75 * vmem_cap)
    except Exception:
        pass
    vmem_limit = int(min(cap, max(32 << 20, vmem_needed)))

    cost = pl.CostEstimate(
        flops=int(5 * B * D + 12 * B),
        transcendentals=int(B),              # one sqrt per row
        bytes_accessed=int(2 * B * D * itemsize + B * t_itemsize
                           + 128 * num_cores * 4),
    )

    kernel = functools.partial(
        _contrastive_loss_kernel,
        batch=B, nb=nb, npc=npc, margin=float(margin),
        eps=_PAIRWISE_EPS, need_mask=need_mask,
    )

    out = pl.pallas_call(
        kernel,
        out_shape=jax.ShapeDtypeStruct((1, 128 * num_cores), jnp.float32),
        grid_spec=pltpu.PrefetchScalarGridSpec(
            num_scalar_prefetch=0,
            grid=(num_cores, npc),
            in_specs=[
                pl.BlockSpec((TB, D), in_map),
                pl.BlockSpec((TB, D), in_map),
                pl.BlockSpec((1, TB), t_map),
            ],
            out_specs=pl.BlockSpec((1, 128), out_map),
        ),
        compiler_params=pltpu.CompilerParams(
            # Leading axis: one slice per TensorCore (v7x); inner axis carries
            # the running partial sum -> reduction axis ("arbitrary").
            dimension_semantics=("parallel", "arbitrary"),
            vmem_limit_bytes=vmem_limit,
        ),
        cost_estimate=cost,
    )(output1, output2, t_row)

    partials = out.reshape(num_cores, 128)[:, 0]
    return jnp.sum(partials) / jnp.float32(B)


def _reference(output1, output2, target, margin=MARGIN):
    o1 = output1.astype(jnp.float32)
    o2 = output2.astype(jnp.float32)
    t = jnp.reshape(target, (-1, 1)).astype(jnp.float32)
    diff = o1 - o2 + _PAIRWISE_EPS
    dist = jnp.sqrt(jnp.sum(diff * diff, axis=-1, keepdims=True))
    per = (1.0 - t) * dist ** 2 + t * jnp.maximum(margin - dist, 0.0) ** 2
    return jnp.mean(per)


if __name__ == "__main__":
    key = jax.random.PRNGKey(0)
    k1, k2, k3 = jax.random.split(key, 3)

    # Small shapes implied by the siamese module: batch=8, hidden=32.
    B, D = 8, 32
    output1 = jax.random.normal(k1, (B, D), dtype=jnp.float32)
    output2 = jax.random.normal(k2, (B, D), dtype=jnp.float32)
    target = jax.random.bernoulli(k3, 0.5, (B, 1)).astype(jnp.float32)

    loss = contrastive_loss(output1, output2, target)
    jax.block_until_ready(loss)
    ref = _reference(output1, output2, target)
    assert jnp.allclose(loss, ref, rtol=1e-5, atol=1e-5), (loss, ref)

    # Also exercise the tiled dual-core path: 3 batch tiles over a (2, 2)
    # grid -> ragged last tile + one clamped, fully-masked phantom block.
    B2, D2 = 300, 128
    o1b = jax.random.normal(k1, (B2, D2), dtype=jnp.float32)
    o2b = jax.random.normal(k2, (B2, D2), dtype=jnp.float32)
    tgt2 = jax.random.bernoulli(k3, 0.5, (B2, 1)).astype(jnp.float32)
    loss2 = contrastive_loss(o1b, o2b, tgt2, block_rows=128)
    jax.block_until_ready(loss2)
    ref2 = _reference(o1b, o2b, tgt2)
    assert jnp.allclose(loss2, ref2, rtol=1e-5, atol=1e-5), (loss2, ref2)

    print("KERNEL_OK")
</pallas_src>

<mosaic_0001>
module attributes {stable_mosaic.version = 11 : i64} {
  func.func @_contrastive_loss_kernel(%arg0: i32, %arg1: i32, %arg2: memref<8x32xf32, #tpu.memory_space<vmem>>, %arg3: memref<8x32xf32, #tpu.memory_space<vmem>>, %arg4: memref<1x8xf32, #tpu.memory_space<vmem>>, %arg5: memref<1x128xf32, #tpu.memory_space<vmem>>) attributes {dimension_semantics = [#tpu.dimension_semantics<parallel>, #tpu.dimension_semantics<arbitrary>], iteration_bounds = array<i64: 1, 1>, scalar_prefetch = 0 : i64, scratch_operands = 0 : i64, tpu.core_type = #tpu.core_type<tc>, window_params = [{transform_indices = @transform_0, window_bounds = array<i64: 8, 32>}, {transform_indices = @transform_1, window_bounds = array<i64: 8, 32>}, {transform_indices = @transform_2, window_bounds = array<i64: 1, 8>}, {transform_indices = @transform_3, window_bounds = array<i64: 1, 128>}]} {
    %c0_i32 = arith.constant 0 : i32
    %0 = arith.cmpi eq, %arg1, %c0_i32 : i32
    %1 = arith.extui %0 : i1 to i32
    %c0_i32_0 = arith.constant 0 : i32
    %2 = arith.cmpi ne, %1, %c0_i32_0 : i32
    scf.if %2 {
      %cst_16 = arith.constant 0.000000e+00 : f32
      %34 = vector.broadcast %cst_16 : f32 to vector<1x128xf32>
      %c0_17 = arith.constant 0 : index
      %c0_18 = arith.constant 0 : index
      %35 = vector.load %arg5[%c0_17, %c0_18] : memref<1x128xf32, #tpu.memory_space<vmem>>, vector<1x128xf32>
      tpu.vector_store %arg5[%c0_17, %c0_18], %34 {strides = array<i32>} : memref<1x128xf32, #tpu.memory_space<vmem>>, vector<1x128xf32>,
    } else {
    }
    %c0 = arith.constant 0 : index
    %c0_1 = arith.constant 0 : index
    %3 = vector.load %arg2[%c0, %c0_1] : memref<8x32xf32, #tpu.memory_space<vmem>>, vector<8x32xf32>
    %c0_2 = arith.constant 0 : index
    %c0_3 = arith.constant 0 : index
    %4 = vector.load %arg3[%c0_2, %c0_3] : memref<8x32xf32, #tpu.memory_space<vmem>>, vector<8x32xf32>
    %c0_4 = arith.constant 0 : index
    %c0_5 = arith.constant 0 : index
    %5 = vector.load %arg4[%c0_4, %c0_5] : memref<1x8xf32, #tpu.memory_space<vmem>>, vector<1x8xf32>
    %6 = arith.subf %3, %4 : vector<8x32xf32>
    %cst = arith.constant 9.99999997E-7 : f32
    %7 = vector.broadcast %cst : f32 to vector<8x32xf32>
    %8 = arith.addf %6, %7 : vector<8x32xf32>
    %9 = arith.mulf %8, %8 : vector<8x32xf32>
    %cst_6 = arith.constant dense<0.000000e+00> : vector<8xf32>
    %10 = vector.multi_reduction <add>, %9, %cst_6 [1] : vector<8x32xf32> to vector<8xf32>
    %11 = vector.shape_cast %10 : vector<8xf32> to vector<8x1xf32>
    %12 = math.sqrt %11 : vector<8x1xf32>
    %13 = arith.mulf %12, %12 : vector<8x1xf32>
    %cst_7 = arith.constant 2.000000e+00 : f32
    %14 = vector.broadcast %cst_7 : f32 to vector<8x1xf32>
    %15 = arith.subf %14, %12 : vector<8x1xf32>
    %cst_8 = arith.constant 0.000000e+00 : f32
    %16 = vector.broadcast %cst_8 : f32 to vector<8x1xf32>
    %17 = arith.maximumf %15, %16 : vector<8x1xf32>
    %18 = arith.mulf %17, %17 : vector<8x1xf32>
    %19 = arith.subf %18, %13 : vector<8x1xf32>
    %cst_9 = arith.constant dense<0.000000e+00> : vector<1x1xf32>
    %20 = tpu.matmul %5, %19, %cst_9 {dimension_numbers = #tpu.dot_dimension_numbers<[1], [0], [0], [1], [0, 0, 1, 1], [], []>, precision = #tpu.contract_precision<fp32>} : vector<1x8xf32>, vector<8x1xf32>, vector<1x1xf32> -> vector<1x1xf32>
    %21 = vector.shape_cast %13 : vector<8x1xf32> to vector<1x8x1xf32>
    %cst_10 = arith.constant dense<0.000000e+00> : vector<1xf32>
    %22 = vector.multi_reduction <add>, %21, %cst_10 [1, 2] : vector<1x8x1xf32> to vector<1xf32>
    %23 = vector.shape_cast %22 : vector<1xf32> to vector<1x1x1xf32>
    %24 = vector.extract %23[0, 0, 0] : f32 from vector<1x1x1xf32>
    %25 = vector.shape_cast %20 : vector<1x1xf32> to vector<1x1x1xf32>
    %cst_11 = arith.constant dense<0.000000e+00> : vector<1xf32>
    %26 = vector.multi_reduction <add>, %25, %cst_11 [1, 2] : vector<1x1x1xf32> to vector<1xf32>
    %27 = vector.shape_cast %26 : vector<1xf32> to vector<1x1x1xf32>
    %28 = vector.extract %27[0, 0, 0] : f32 from vector<1x1x1xf32>
    %29 = arith.addf %24, %28 : f32
    %c0_12 = arith.constant 0 : index
    %c0_13 = arith.constant 0 : index
    %30 = vector.load %arg5[%c0_12, %c0_13] : memref<1x128xf32, #tpu.memory_space<vmem>>, vector<1x128xf32>
    %31 = vector.broadcast %29 : f32 to vector<1x128xf32>
    %32 = arith.addf %30, %31 : vector<1x128xf32>
    %c0_14 = arith.constant 0 : index
    %c0_15 = arith.constant 0 : index
    %33 = vector.load %arg5[%c0_14, %c0_15] : memref<1x128xf32, #tpu.memory_space<vmem>>, vector<1x128xf32>
    tpu.vector_store %arg5[%c0_14, %c0_15], %32 {strides = array<i32>} : memref<1x128xf32, #tpu.memory_space<vmem>>, vector<1x128xf32>,
    return
  }
  func.func @transform_0(%arg0: i32, %arg1: i32) -> (i32, i32) {
    %c1_i32 = arith.constant 1 : i32
    %0 = arith.muli %arg0, %c1_i32 : i32
    %1 = arith.addi %0, %arg1 : i32
    %c0_i32 = arith.constant 0 : i32
    %2 = arith.minsi %1, %c0_i32 : i32
    %c0_i32_0 = arith.constant 0 : i32
    %c0_i32_1 = arith.constant 0 : i32
    return %2, %c0_i32_0 : i32, i32
  }
  func.func @transform_1(%arg0: i32, %arg1: i32) -> (i32, i32) {
    %c1_i32 = arith.constant 1 : i32
    %0 = arith.muli %arg0, %c1_i32 : i32
    %1 = arith.addi %0, %arg1 : i32
    %c0_i32 = arith.constant 0 : i32
    %2 = arith.minsi %1, %c0_i32 : i32
    %c0_i32_0 = arith.constant 0 : i32
    %c0_i32_1 = arith.constant 0 : i32
    return %2, %c0_i32_0 : i32, i32
  }
  func.func @transform_2(%arg0: i32, %arg1: i32) -> (i32, i32) {
    %c1_i32 = arith.constant 1 : i32
    %0 = arith.muli %arg0, %c1_i32 : i32
    %1 = arith.addi %0, %arg1 : i32
    %c0_i32 = arith.constant 0 : i32
    %2 = arith.minsi %1, %c0_i32 : i32
    %c0_i32_0 = arith.constant 0 : i32
    %c0_i32_1 = arith.constant 0 : i32
    return %c0_i32_0, %2 : i32, i32
  }
  func.func @transform_3(%arg0: i32, %arg1: i32) -> (i32, i32) {
    %c0_i32 = arith.constant 0 : i32
    %c0_i32_0 = arith.constant 0 : i32
    return %c0_i32, %arg0 : i32, i32
  }
}

</mosaic_0001>

<llo_original>
// kernel: tpu_custom_call.1
$region0: #{tpu_custom_call.1}
  #allocation0 [shape = 'u32[]', space=smem, size = 0x4, offset = 0x4, fixed_abs, tag = 'smem constant byte address 0x4 - core index']
  #allocation1 [shape = 'u32[144,128]{1,0:T(1,128)}', space=vmem, size = 0x12000, scoped, tag = 'internal scratch']
  %s0 = inlined_call_operand.hbm [shape: f32[8,32], index: 0, kind: input, shape index: {}]
  %s1 = inlined_call_operand.hbm [shape: f32[8,32], index: 1, kind: input, shape index: {}]
  %s2 = inlined_call_operand.vmem [shape: f32[1,8], index: 2, kind: input, shape index: {}]
  %s3 = inlined_call_operand.hbm [shape: f32[1,128], index: 3, kind: output, shape index: {}]
  %s4 = sld [smem:[#allocation0]]
  $region34: #{tpu_custom_call.1} parent=0
    _
  %s6 = ssub.s32 1, %s4
  %s7 = scalar_select 0, %s6, %s4
  $region1: #{tpu_custom_call.1} parent=0
    #allocation2 [shape = 'u8[4096]{0}', space=vmem, size = 0x1000, scoped, tag = 'input window, operand 0, single buffered']
    #allocation3 [shape = 's32[1]{0}', space=sflag, size = 0x4, scoped, tag = 'scoped memory for tpu_custom_call.1']
    #allocation4 [shape = 's32[1]{0}', space=sflag, size = 0x4, scoped, tag = 'scoped memory for tpu_custom_call.1']
    #allocation5 [shape = 'u8[4096]{0}', space=vmem, size = 0x1000, scoped, tag = 'input window, operand 1, single buffered']
    #allocation6 [shape = 's32[1]{0}', space=sflag, size = 0x4, scoped, tag = 'scoped memory for tpu_custom_call.1']
    #allocation7 [shape = 'u8[512]{0}', space=vmem, size = 0x400, scoped, tag = 'output window, operand 0, single buffered']
    %8 = vsyncpa [#allocation3], 0
    %9 = vsyncpa [#allocation6], 0
    %10 = vsyncpa [#allocation4], 0
    // Predicated region
    $region2: #{tpu_custom_call.1} parent=1 // pred_check
      _
    $region3: #{tpu_custom_call.1} parent=1 // pred_check_branch
      %12 = sbr.rel (0) target = $region5
    $region4: #{tpu_custom_call.1} parent=1 // pred_region
      %s13 = sadd.s32 0, 0
      %p14 = scmp.lt.s32.totalorder %s13, 0
      %s15 = scalar_select %p14, %s13, 0
      %s17 = ssub.s32 128, 128
      %18 = vsyncadd [#allocation3], %s17
      %s19 = smul.addr %s15, 128
      %s20 = scalar_lea.hbm %s0, %s19
      %s22 = sshll.u32 [#allocation2], 4
      %s23 = int_to_ptr.vmem [resolvable:$true] %s22
      %25 = dma.hbm_to_vmem [thread:$0]  %s20, 128, %s23, [#allocation3]
    $region5: #{tpu_custom_call.1} parent=1 // pred_fallthru
      _
    // Predicated region
    $region6: #{tpu_custom_call.1} parent=1 // pred_check
      _
    $region7: #{tpu_custom_call.1} parent=1 // pred_check_branch
      %27 = sbr.rel (0) target = $region9
    $region8: #{tpu_custom_call.1} parent=1 // pred_region
      %s28 = sadd.s32 0, 0
      %p29 = scmp.lt.s32.totalorder %s28, 0
      %s30 = scalar_select %p29, %s28, 0
      %s32 = ssub.s32 128, 128
      %33 = vsyncadd [#allocation6], %s32
      %s34 = smul.addr %s30, 128
      %s35 = scalar_lea.hbm %s1, %s34
      %s37 = sshll.u32 [#allocation5], 4
      %s38 = int_to_ptr.vmem [resolvable:$true] %s37
      %40 = dma.hbm_to_vmem [thread:$0]  %s35, 128, %s38, [#allocation6]
    $region9: #{tpu_custom_call.1} parent=1 // pred_fallthru
      _
    // Predicated region
    $region10: #{tpu_custom_call.1} parent=1 // pred_check
      _
    $region11: #{tpu_custom_call.1} parent=1 // pred_check_branch
      %42 = sbr.rel (0) target = $region13
    $region12: #{tpu_custom_call.1} parent=1 // pred_region
      %s43 = sadd.s32 0, 0
      %p44 = scmp.lt.s32.totalorder %s43, 0
      %s45 = scalar_select %p44, %s43, 0
      %p46 = scmp.lt.s32.totalorder %s45, 0
      %s47 = scalar_select %p46, %s45, 0
      %s48 = scalar_lea.vmem %s2, %s47
      %s49 = sadd.s32 0, 0
      %p50 = scmp.lt.s32.totalorder %s49, 0
      %s51 = scalar_select %p50, %s49, 0
    $region13: #{tpu_custom_call.1} parent=1 // pred_fallthru
      _
    // Predicated region
    $region14: #{tpu_custom_call.1} parent=1 // pred_check
      _
    $region15: #{tpu_custom_call.1} parent=1 // pred_check_branch
      %53 = sbr.rel (0) target = $region17
    $region16: #{tpu_custom_call.1} parent=1 // pred_region
      %54 = dma.done [#allocation3], 128
    $region17: #{tpu_custom_call.1} parent=1 // pred_fallthru
      _
    // Predicated region
    $region18: #{tpu_custom_call.1} parent=1 // pred_check
      _
    $region19: #{tpu_custom_call.1} parent=1 // pred_check_branch
      %56 = sbr.rel (0) target = $region21
    $region20: #{tpu_custom_call.1} parent=1 // pred_region
      %57 = dma.done [#allocation6], 128
    $region21: #{tpu_custom_call.1} parent=1 // pred_fallthru
      _
    %s58 = sadd.s32 0, 0
    %p59 = scmp.lt.s32.totalorder %s58, 0
    %s60 = scalar_select %p59, %s58, 0
    %p61 = scmp.lt.s32.totalorder %s60, 0
    %s62 = scalar_select %p61, %s60, 0
    %s63 = scalar_lea.vmem %s2, %s62
    %s64 = sadd.s32 0, 0
    %p65 = scmp.lt.s32.totalorder %s64, 0
    %s66 = scalar_select %p65, %s64, 0
    %s67 = sadd.s32 0, 0
    %p68 = scmp.lt.s32.totalorder %s67, 0
    %s69 = scalar_select %p68, %s67, 0
    %s70 = sadd.s32 0, 0
    %p71 = scmp.lt.s32.totalorder %s70, 0
    %s72 = scalar_select %p71, %s70, 0
    %p73 = scmp.lt.s32.totalorder %s72, 0
    %s74 = scalar_select %p73, %s72, 0
    %s75 = scalar_lea.vmem %s2, %s74
    %s76 = sadd.s32 0, 0
    %p77 = scmp.lt.s32.totalorder %s76, 0
    %s78 = scalar_select %p77, %s76, 0
    %p79 = scmp.eq.s32.totalorder 0, 0
    // Predicated region
    $region22: #{tpu_custom_call.1} parent=1 // pred_check
      %p80 = pneg %p79
    $region23: #{tpu_custom_call.1} parent=1 // pred_check_branch
      %82 = sbr.rel (%p80) target = $region25
    $region24: #{tpu_custom_call.1} parent=1 // pred_region
      %83 = vst [vmem:[#allocation7] sm:$0x1] 0.0
    $region25: #{tpu_custom_call.1} parent=1 // pred_fallthru
      _
    %v84 = vld [vmem:[#allocation2] sm:$0xff]
    %v85 = vld [vmem:[#allocation5] sm:$0xff]
    %v86 = vld [vmem:[%s75] sm:$0x1]
    %v87 = vsub.f32 %v84, %v85
    %v88 = vadd.f32 %v87, 1e-06
    %v89 = vmul.f32 %v88, %v88
    %vm90 = vcmask 261120
    %v91 = vsel %vm90, %v89, 0.0
    %92 = vadd.xlane.f32.xlu0 %v91
    %v93 = vpop.xlane.xlu0 %92
    %v94 = vrsqrt.pop %v93
    %v95 = vmul.f32 %v93, %v94
    %vm96 = vcmp.eq.f32.partialorder %v93, inf
    %v97 = vsel %vm96, %v93, %v95
    %vm98 = vcmp.eq.f32.partialorder %v93, 0.0
    %v99 = vand.u32 %v93, 2147483648
    %v100 = vsel %vm98, %v99, %v97
    %v101 = vmul.f32 %v100, %v100
    %v102 = vsub.f32 2.0, %v100
    %v103 = vmax.f32 %v102, 0.0
    %v104 = vmul.f32 %v103, %v103
    %v105 = vsub.f32 %v104, %v101
    %vm106 = vcmask 64512
    %v108 = vsel %vm106, %v86, 0
    %110 = vmatprep.subr.mxu0 0.0
    %v111 = vand.u32 %v105, 4294901760
    %112 = vmatpush1.msra.mxu0 %v111
    %113 = vmatprep.subr.mxu0 0.0
    %114 = vmatpush1.msra.mxu0 0.0
    %115 = vmatprep.subr.mxu0 0.0
    %116 = vmatpush1.msra.mxu0 0.0
    %117 = vmatprep.subr.mxu0 0.0
    %118 = vmatpush1.msra.mxu0 0.0
    %119 = vmatprep.subr.mxu0 0.0
    %120 = vmatpush1.msra.mxu0 0.0
    %121 = vmatprep.subr.mxu0 0.0
    %122 = vmatpush1.msra.mxu0 0.0
    %123 = vmatprep.subr.mxu0 0.0
    %124 = vmatpush1.msra.mxu0 0.0
    %125 = vmatprep.subr.mxu0 0.0
    %126 = vmatpush1.msra.mxu0 0.0
    %127 = vmatprep.subr.mxu0 0.0
    %128 = vmatpush1.msra.mxu0 0.0
    %129 = vmatprep.subr.mxu0 0.0
    %130 = vmatpush1.msra.mxu0 0.0
    %131 = vmatprep.subr.mxu0 0.0
    %132 = vmatpush1.msra.mxu0 0.0
    %133 = vmatprep.subr.mxu0 0.0
    %134 = vmatpush1.msra.mxu0 0.0
    %135 = vmatprep.subr.mxu0 0.0
    %136 = vmatpush1.msra.mxu0 0.0
    %137 = vmatprep.subr.mxu0 0.0
    %138 = vmatpush1.msra.mxu0 0.0
    %139 = vmatprep.subr.mxu0 0.0
    %140 = vmatpush1.msra.mxu0 0.0
    %141 = vmatprep.subr.mxu0 0.0
    %142 = vmatpush1.msra.mxu0 0.0
    %143 = vmatprep.subr.mxu0 0.0
    %144 = vmatpush1.msra.mxu0 0.0
    %145 = vmatprep.subr.mxu0 0.0
    %146 = vmatpush1.msra.mxu0 0.0
    %147 = vmatprep.subr.mxu0 0.0
    %148 = vmatpush1.msra.mxu0 0.0
    %149 = vmatprep.subr.mxu0 0.0
    %150 = vmatpush1.msra.mxu0 0.0
    %151 = vmatprep.subr.mxu0 0.0
    %152 = vmatpush1.msra.mxu0 0.0
    %153 = vmatprep.subr.mxu0 0.0
    %154 = vmatpush1.msra.mxu0 0.0
    %155 = vmatprep.subr.mxu0 0.0
    %156 = vmatpush1.msra.mxu0 0.0
    %157 = vmatprep.subr.mxu0 0.0
    %158 = vmatpush1.msra.mxu0 0.0
    %159 = vmatprep.subr.mxu0 0.0
    %160 = vmatpush1.msra.mxu0 0.0
    %161 = vmatprep.subr.mxu0 0.0
    %162 = vmatpush1.msra.mxu0 0.0
    %163 = vmatprep.subr.mxu0 0.0
    %164 = vmatpush1.msra.mxu0 0.0
    %165 = vmatprep.subr.mxu0 0.0
    %166 = vmatpush1.msra.mxu0 0.0
    %167 = vmatprep.subr.mxu0 0.0
    %168 = vmatpush1.msra.mxu0 0.0
    %169 = vmatprep.subr.mxu0 0.0
    %170 = vmatpush1.msra.mxu0 0.0
    %171 = vmatprep.subr.mxu0 0.0
    %172 = vmatpush1.msra.mxu0 0.0
    %173 = vmatprep.subr.mxu0 0.0
    %174 = vmatpush1.msra.mxu0 0.0
    %175 = vmatprep.mubr.f32.mxu0 0.0
    %v176 = vand.u32 %v108, 4294901760
    %v177 = vsub.f32 %v108, %v176
    %v178 = vand.u32 %v177, 4294901760
    %v179 = vsub.f32 %v177, %v178
    %v180 = vand.u32 %v179, 4294901760
    %181 = vmatmul.mubr.f32.gmra.mrb[0].mxu0 %v180
    %v182 = vpop.f32.mrb[0].mxu0
    %v183 = vadd.f32 0.0, %v182
    %v184 = vpop.f32.mrb[0].mxu0
    %185 = vdwg.mxu0
    %186 = vmatprep.subr.mxu0 0.0
    %v187 = vand.u32 %v105, 4294901760
    %v188 = vsub.f32 %v105, %v187
    %v189 = vand.u32 %v188, 4294901760
    %v190 = vsub.f32 %v188, %v189
    %v191 = vand.u32 %v190, 4294901760
    %192 = vmatpush1.msra.mxu0 %v191
    %193 = vmatprep.subr.mxu0 0.0
    %194 = vmatpush1.msra.mxu0 0.0
    %195 = vmatprep.subr.mxu0 0.0
    %196 = vmatpush1.msra.mxu0 0.0
    %197 = vmatprep.subr.mxu0 0.0
    %198 = vmatpush1.msra.mxu0 0.0
    %199 = vmatprep.subr.mxu0 0.0
    %200 = vmatpush1.msra.mxu0 0.0
    %201 = vmatprep.subr.mxu0 0.0
    %202 = vmatpush1.msra.mxu0 0.0
    %203 = vmatprep.subr.mxu0 0.0
    %204 = vmatpush1.msra.mxu0 0.0
    %205 = vmatprep.subr.mxu0 0.0
    %206 = vmatpush1.msra.mxu0 0.0
    %207 = vmatprep.subr.mxu0 0.0
    %208 = vmatpush1.msra.mxu0 0.0
    %209 = vmatprep.subr.mxu0 0.0
    %210 = vmatpush1.msra.mxu0 0.0
    %211 = vmatprep.subr.mxu0 0.0
    %212 = vmatpush1.msra.mxu0 0.0
    %213 = vmatprep.subr.mxu0 0.0
    %214 = vmatpush1.msra.mxu0 0.0
    %215 = vmatprep.subr.mxu0 0.0
    %216 = vmatpush1.msra.mxu0 0.0
    %217 = vmatprep.subr.mxu0 0.0
    %218 = vmatpush1.msra.mxu0 0.0
    %219 = vmatprep.subr.mxu0 0.0
    %220 = vmatpush1.msra.mxu0 0.0
    %221 = vmatprep.subr.mxu0 0.0
    %222 = vmatpush1.msra.mxu0 0.0
    %223 = vmatprep.subr.mxu0 0.0
    %224 = vmatpush1.msra.mxu0 0.0
    %225 = vmatprep.subr.mxu0 0.0
    %226 = vmatpush1.msra.mxu0 0.0
    %227 = vmatprep.subr.mxu0 0.0
    %228 = vmatpush1.msra.mxu0 0.0
    %229 = vmatprep.subr.mxu0 0.0
    %230 = vmatpush1.msra.mxu0 0.0
    %231 = vmatprep.subr.mxu0 0.0
    %232 = vmatpush1.msra.mxu0 0.0
    %233 = vmatprep.subr.mxu0 0.0
    %234 = vmatpush1.msra.mxu0 0.0
    %235 = vmatprep.subr.mxu0 0.0
    %236 = vmatpush1.msra.mxu0 0.0
    %237 = vmatprep.subr.mxu0 0.0
    %238 = vmatpush1.msra.mxu0 0.0
    %239 = vmatprep.subr.mxu0 0.0
    %240 = vmatpush1.msra.mxu0 0.0
    %241 = vmatprep.subr.mxu0 0.0
    %242 = vmatpush1.msra.mxu0 0.0
    %243 = vmatprep.subr.mxu0 0.0
    %244 = vmatpush1.msra.mxu0 0.0
    %245 = vmatprep.subr.mxu0 0.0
    %246 = vmatpush1.msra.mxu0 0.0
    %247 = vmatprep.subr.mxu0 0.0
    %248 = vmatpush1.msra.mxu0 0.0
    %249 = vmatprep.subr.mxu0 0.0
    %250 = vmatpush1.msra.mxu0 0.0
    %251 = vmatprep.subr.mxu0 0.0
    %252 = vmatpush1.msra.mxu0 0.0
    %253 = vmatprep.subr.mxu0 0.0
    %254 = vmatpush1.msra.mxu0 0.0
    %255 = vmatprep.mubr.f32.mxu0 0.0
    %v256 = vand.u32 %v108, 4294901760
    %257 = vmatmul.mubr.f32.gmra.mrb[0].mxu0 %v256
    %v258 = vpop.f32.mrb[0].mxu0
    %v259 = vadd.f32 %v183, %v258
    %v260 = vpop.f32.mrb[0].mxu0
    %261 = vdwg.mxu0
    %262 = vmatprep.subr.mxu0 0.0
    %v263 = vand.u32 %v105, 4294901760
    %v264 = vsub.f32 %v105, %v263
    %265 = vmatpush1.msra.mxu0 %v264
    %266 = vmatprep.subr.mxu0 0.0
    %267 = vmatpush1.msra.mxu0 0.0
    %268 = vmatprep.subr.mxu0 0.0
    %269 = vmatpush1.msra.mxu0 0.0
    %270 = vmatprep.subr.mxu0 0.0
    %271 = vmatpush1.msra.mxu0 0.0
    %272 = vmatprep.subr.mxu0 0.0
    %273 = vmatpush1.msra.mxu0 0.0
    %274 = vmatprep.subr.mxu0 0.0
    %275 = vmatpush1.msra.mxu0 0.0
    %276 = vmatprep.subr.mxu0 0.0
    %277 = vmatpush1.msra.mxu0 0.0
    %278 = vmatprep.subr.mxu0 0.0
    %279 = vmatpush1.msra.mxu0 0.0
    %280 = vmatprep.subr.mxu0 0.0
    %281 = vmatpush1.msra.mxu0 0.0
    %282 = vmatprep.subr.mxu0 0.0
    %283 = vmatpush1.msra.mxu0 0.0
    %284 = vmatprep.subr.mxu0 0.0
    %285 = vmatpush1.msra.mxu0 0.0
    %286 = vmatprep.subr.mxu0 0.0
    %287 = vmatpush1.msra.mxu0 0.0
    %288 = vmatprep.subr.mxu0 0.0
    %289 = vmatpush1.msra.mxu0 0.0
    %290 = vmatprep.subr.mxu0 0.0
    %291 = vmatpush1.msra.mxu0 0.0
    %292 = vmatprep.subr.mxu0 0.0
    %293 = vmatpush1.msra.mxu0 0.0
    %294 = vmatprep.subr.mxu0 0.0
    %295 = vmatpush1.msra.mxu0 0.0
    %296 = vmatprep.subr.mxu0 0.0
    %297 = vmatpush1.msra.mxu0 0.0
    %298 = vmatprep.subr.mxu0 0.0
    %299 = vmatpush1.msra.mxu0 0.0
    %300 = vmatprep.subr.mxu0 0.0
    %301 = vmatpush1.msra.mxu0 0.0
    %302 = vmatprep.subr.mxu0 0.0
    %303 = vmatpush1.msra.mxu0 0.0
    %304 = vmatprep.subr.mxu0 0.0
    %305 = vmatpush1.msra.mxu0 0.0
    %306 = vmatprep.subr.mxu0 0.0
    %307 = vmatpush1.msra.mxu0 0.0
    %308 = vmatprep.subr.mxu0 0.0
    %309 = vmatpush1.msra.mxu0 0.0
    %310 = vmatprep.subr.mxu0 0.0
    %311 = vmatpush1.msra.mxu0 0.0
    %312 = vmatprep.subr.mxu0 0.0
    %313 = vmatpush1.msra.mxu0 0.0
    %314 = vmatprep.subr.mxu0 0.0
    %315 = vmatpush1.msra.mxu0 0.0
    %316 = vmatprep.subr.mxu0 0.0
    %317 = vmatpush1.msra.mxu0 0.0
    %318 = vmatprep.subr.mxu0 0.0
    %319 = vmatpush1.msra.mxu0 0.0
    %320 = vmatprep.subr.mxu0 0.0
    %321 = vmatpush1.msra.mxu0 0.0
    %322 = vmatprep.subr.mxu0 0.0
    %323 = vmatpush1.msra.mxu0 0.0
    %324 = vmatprep.subr.mxu0 0.0
    %325 = vmatpush1.msra.mxu0 0.0
    %326 = vmatprep.subr.mxu0 0.0
    %327 = vmatpush1.msra.mxu0 0.0
    %328 = vmatprep.mubr.f32.mxu0 0.0
    %v329 = vand.u32 %v108, 4294901760
    %v330 = vsub.f32 %v108, %v329
    %331 = vmatmul.mubr.f32.gmra.mrb[0].mxu0 %v330
    %v332 = vpop.f32.mrb[0].mxu0
    %v333 = vadd.f32 %v259, %v332
    %v334 = vpop.f32.mrb[0].mxu0
    %335 = vdwg.mxu0
    %336 = vmatprep.subr.mxu0 0.0
    %v337 = vand.u32 %v105, 4294901760
    %338 = vmatpush1.msra.mxu0 %v337
    %339 = vmatprep.subr.mxu0 0.0
    %340 = vmatpush1.msra.mxu0 0.0
    %341 = vmatprep.subr.mxu0 0.0
    %342 = vmatpush1.msra.mxu0 0.0
    %343 = vmatprep.subr.mxu0 0.0
    %344 = vmatpush1.msra.mxu0 0.0
    %345 = vmatprep.subr.mxu0 0.0
    %346 = vmatpush1.msra.mxu0 0.0
    %347 = vmatprep.subr.mxu0 0.0
    %348 = vmatpush1.msra.mxu0 0.0
    %349 = vmatprep.subr.mxu0 0.0
    %350 = vmatpush1.msra.mxu0 0.0
    %351 = vmatprep.subr.mxu0 0.0
    %352 = vmatpush1.msra.mxu0 0.0
    %353 = vmatprep.subr.mxu0 0.0
    %354 = vmatpush1.msra.mxu0 0.0
    %355 = vmatprep.subr.mxu0 0.0
    %356 = vmatpush1.msra.mxu0 0.0
    %357 = vmatprep.subr.mxu0 0.0
    %358 = vmatpush1.msra.mxu0 0.0
    %359 = vmatprep.subr.mxu0 0.0
    %360 = vmatpush1.msra.mxu0 0.0
    %361 = vmatprep.subr.mxu0 0.0
    %362 = vmatpush1.msra.mxu0 0.0
    %363 = vmatprep.subr.mxu0 0.0
    %364 = vmatpush1.msra.mxu0 0.0
    %365 = vmatprep.subr.mxu0 0.0
    %366 = vmatpush1.msra.mxu0 0.0
    %367 = vmatprep.subr.mxu0 0.0
    %368 = vmatpush1.msra.mxu0 0.0
    %369 = vmatprep.subr.mxu0 0.0
    %370 = vmatpush1.msra.mxu0 0.0
    %371 = vmatprep.subr.mxu0 0.0
    %372 = vmatpush1.msra.mxu0 0.0
    %373 = vmatprep.subr.mxu0 0.0
    %374 = vmatpush1.msra.mxu0 0.0
    %375 = vmatprep.subr.mxu0 0.0
    %376 = vmatpush1.msra.mxu0 0.0
    %377 = vmatprep.subr.mxu0 0.0
    %378 = vmatpush1.msra.mxu0 0.0
    %379 = vmatprep.subr.mxu0 0.0
    %380 = vmatpush1.msra.mxu0 0.0
    %381 = vmatprep.subr.mxu0 0.0
    %382 = vmatpush1.msra.mxu0 0.0
    %383 = vmatprep.subr.mxu0 0.0
    %384 = vmatpush1.msra.mxu0 0.0
    %385 = vmatprep.subr.mxu0 0.0
    %386 = vmatpush1.msra.mxu0 0.0
    %387 = vmatprep.subr.mxu0 0.0
    %388 = vmatpush1.msra.mxu0 0.0
    %389 = vmatprep.subr.mxu0 0.0
    %390 = vmatpush1.msra.mxu0 0.0
    %391 = vmatprep.subr.mxu0 0.0
    %392 = vmatpush1.msra.mxu0 0.0
    %393 = vmatprep.subr.mxu0 0.0
    %394 = vmatpush1.msra.mxu0 0.0
    %395 = vmatprep.subr.mxu0 0.0
    %396 = vmatpush1.msra.mxu0 0.0
    %397 = vmatprep.subr.mxu0 0.0
    %398 = vmatpush1.msra.mxu0 0.0
    %399 = vmatprep.subr.mxu0 0.0
    %400 = vmatpush1.msra.mxu0 0.0
    %401 = vmatprep.mubr.f32.mxu0 0.0
    %v402 = vand.u32 %v108, 4294901760
    %v403 = vsub.f32 %v108, %v402
    %v404 = vand.u32 %v403, 4294901760
    %405 = vmatmul.mubr.f32.gmra.mrb[0].mxu0 %v404
    %v406 = vpop.f32.mrb[0].mxu0
    %v407 = vadd.f32 %v333, %v406
    %v408 = vpop.f32.mrb[0].mxu0
    %409 = vdwg.mxu0
    %410 = vmatprep.subr.mxu0 0.0
    %v411 = vand.u32 %v105, 4294901760
    %v412 = vsub.f32 %v105, %v411
    %v413 = vand.u32 %v412, 4294901760
    %414 = vmatpush1.msra.mxu0 %v413
    %415 = vmatprep.subr.mxu0 0.0
    %416 = vmatpush1.msra.mxu0 0.0
    %417 = vmatprep.subr.mxu0 0.0
    %418 = vmatpush1.msra.mxu0 0.0
    %419 = vmatprep.subr.mxu0 0.0
    %420 = vmatpush1.msra.mxu0 0.0
    %421 = vmatprep.subr.mxu0 0.0
    %422 = vmatpush1.msra.mxu0 0.0
    %423 = vmatprep.subr.mxu0 0.0
    %424 = vmatpush1.msra.mxu0 0.0
    %425 = vmatprep.subr.mxu0 0.0
    %426 = vmatpush1.msra.mxu0 0.0
    %427 = vmatprep.subr.mxu0 0.0
    %428 = vmatpush1.msra.mxu0 0.0
    %429 = vmatprep.subr.mxu0 0.0
    %430 = vmatpush1.msra.mxu0 0.0
    %431 = vmatprep.subr.mxu0 0.0
    %432 = vmatpush1.msra.mxu0 0.0
    %433 = vmatprep.subr.mxu0 0.0
    %434 = vmatpush1.msra.mxu0 0.0
    %435 = vmatprep.subr.mxu0 0.0
    %436 = vmatpush1.msra.mxu0 0.0
    %437 = vmatprep.subr.mxu0 0.0
    %438 = vmatpush1.msra.mxu0 0.0
    %439 = vmatprep.subr.mxu0 0.0
    %440 = vmatpush1.msra.mxu0 0.0
    %441 = vmatprep.subr.mxu0 0.0
    %442 = vmatpush1.msra.mxu0 0.0
    %443 = vmatprep.subr.mxu0 0.0
    %444 = vmatpush1.msra.mxu0 0.0
    %445 = vmatprep.subr.mxu0 0.0
    %446 = vmatpush1.msra.mxu0 0.0
    %447 = vmatprep.subr.mxu0 0.0
    %448 = vmatpush1.msra.mxu0 0.0
    %449 = vmatprep.subr.mxu0 0.0
    %450 = vmatpush1.msra.mxu0 0.0
    %451 = vmatprep.subr.mxu0 0.0
    %452 = vmatpush1.msra.mxu0 0.0
    %453 = vmatprep.subr.mxu0 0.0
    %454 = vmatpush1.msra.mxu0 0.0
    %455 = vmatprep.subr.mxu0 0.0
    %456 = vmatpush1.msra.mxu0 0.0
    %457 = vmatprep.subr.mxu0 0.0
    %458 = vmatpush1.msra.mxu0 0.0
    %459 = vmatprep.subr.mxu0 0.0
    %460 = vmatpush1.msra.mxu0 0.0
    %461 = vmatprep.subr.mxu0 0.0
    %462 = vmatpush1.msra.mxu0 0.0
    %463 = vmatprep.subr.mxu0 0.0
    %464 = vmatpush1.msra.mxu0 0.0
    %465 = vmatprep.subr.mxu0 0.0
    %466 = vmatpush1.msra.mxu0 0.0
    %467 = vmatprep.subr.mxu0 0.0
    %468 = vmatpush1.msra.mxu0 0.0
    %469 = vmatprep.subr.mxu0 0.0
    %470 = vmatpush1.msra.mxu0 0.0
    %471 = vmatprep.subr.mxu0 0.0
    %472 = vmatpush1.msra.mxu0 0.0
    %473 = vmatprep.subr.mxu0 0.0
    %474 = vmatpush1.msra.mxu0 0.0
    %475 = vmatprep.subr.mxu0 0.0
    %476 = vmatpush1.msra.mxu0 0.0
    %477 = vmatprep.mubr.f32.mxu0 0.0
    %v478 = vand.u32 %v108, 4294901760
    %479 = vmatmul.mubr.f32.gmra.mrb[0].mxu0 %v478
    %v480 = vpop.f32.mrb[0].mxu0
    %v481 = vadd.f32 %v407, %v480
    %v482 = vpop.f32.mrb[0].mxu0
    %483 = vdwg.mxu0
    %484 = vmatprep.subr.mxu0 0.0
    %v485 = vand.u32 %v105, 4294901760
    %486 = vmatpush1.msra.mxu0 %v485
    %487 = vmatprep.subr.mxu0 0.0
    %488 = vmatpush1.msra.mxu0 0.0
    %489 = vmatprep.subr.mxu0 0.0
    %490 = vmatpush1.msra.mxu0 0.0
    %491 = vmatprep.subr.mxu0 0.0
    %492 = vmatpush1.msra.mxu0 0.0
    %493 = vmatprep.subr.mxu0 0.0
    %494 = vmatpush1.msra.mxu0 0.0
    %495 = vmatprep.subr.mxu0 0.0
    %496 = vmatpush1.msra.mxu0 0.0
    %497 = vmatprep.subr.mxu0 0.0
    %498 = vmatpush1.msra.mxu0 0.0
    %499 = vmatprep.subr.mxu0 0.0
    %500 = vmatpush1.msra.mxu0 0.0
    %501 = vmatprep.subr.mxu0 0.0
    %502 = vmatpush1.msra.mxu0 0.0
    %503 = vmatprep.subr.mxu0 0.0
    %504 = vmatpush1.msra.mxu0 0.0
    %505 = vmatprep.subr.mxu0 0.0
    %506 = vmatpush1.msra.mxu0 0.0
    %507 = vmatprep.subr.mxu0 0.0
    %508 = vmatpush1.msra.mxu0 0.0
    %509 = vmatprep.subr.mxu0 0.0
    %510 = vmatpush1.msra.mxu0 0.0
    %511 = vmatprep.subr.mxu0 0.0
    %512 = vmatpush1.msra.mxu0 0.0
    %513 = vmatprep.subr.mxu0 0.0
    %514 = vmatpush1.msra.mxu0 0.0
    %515 = vmatprep.subr.mxu0 0.0
    %516 = vmatpush1.msra.mxu0 0.0
    %517 = vmatprep.subr.mxu0 0.0
    %518 = vmatpush1.msra.mxu0 0.0
    %519 = vmatprep.subr.mxu0 0.0
    %520 = vmatpush1.msra.mxu0 0.0
    %521 = vmatprep.subr.mxu0 0.0
    %522 = vmatpush1.msra.mxu0 0.0
    %523 = vmatprep.subr.mxu0 0.0
    %524 = vmatpush1.msra.mxu0 0.0
    %525 = vmatprep.subr.mxu0 0.0
    %526 = vmatpush1.msra.mxu0 0.0
    %527 = vmatprep.subr.mxu0 0.0
    %528 = vmatpush1.msra.mxu0 0.0
    %529 = vmatprep.subr.mxu0 0.0
    %530 = vmatpush1.msra.mxu0 0.0
    %531 = vmatprep.subr.mxu0 0.0
    %532 = vmatpush1.msra.mxu0 0.0
    %533 = vmatprep.subr.mxu0 0.0
    %534 = vmatpush1.msra.mxu0 0.0
    %535 = vmatprep.subr.mxu0 0.0
    %536 = vmatpush1.msra.mxu0 0.0
    %537 = vmatprep.subr.mxu0 0.0
    %538 = vmatpush1.msra.mxu0 0.0
    %539 = vmatprep.subr.mxu0 0.0
    %540 = vmatpush1.msra.mxu0 0.0
    %541 = vmatprep.subr.mxu0 0.0
    %542 = vmatpush1.msra.mxu0 0.0
    %543 = vmatprep.subr.mxu0 0.0
    %544 = vmatpush1.msra.mxu0 0.0
    %545 = vmatprep.subr.mxu0 0.0
    %546 = vmatpush1.msra.mxu0 0.0
    %547 = vmatprep.subr.mxu0 0.0
    %548 = vmatpush1.msra.mxu0 0.0
    %549 = vmatprep.mubr.f32.mxu0 0.0
    %v550 = vand.u32 %v108, 4294901760
    %551 = vmatmul.mubr.f32.gmra.mrb[0].mxu0 %v550
    %v552 = vpop.f32.mrb[0].mxu0
    %v553 = vadd.f32 %v481, %v552
    %v554 = vpop.f32.mrb[0].mxu0
    %555 = vdwg.mxu0
    %vm556 = vcmask 7168
    %v557 = vsel %vm556, %v101, 0.0
    %558 = vadd.xlane.f32.xlu0 %v557
    %v559 = vpop.xlane.xlu0 %558
    %v560 = vrot.slane %v559, 4
    %v561 = vadd.f32 %v559, %v560
    %v562 = vrot.slane %v561, 2
    %v563 = vadd.f32 %v561, %v562
    %v564 = vrot.slane %v563, 1
    %v565 = vadd.f32 %v563, %v564
    %s566 = vtos %v565
    %v567 = vadd.f32 %v553, 0.0
    %s568 = vtos %v567
    %s569 = sadd.f32 %s566, %s568
    %v570 = vld [vmem:[#allocation7] sm:$0x1]
    %v571 = vstv %s569
    %v572 = vadd.f32 %v570, %v571
    %573 = vst [vmem:[#allocation7] sm:$0x1] %v572
    // Predicated region
    $region26: #{tpu_custom_call.1} parent=1 // pred_check
      _
    $region27: #{tpu_custom_call.1} parent=1 // pred_check_branch
      %575 = sbr.rel (0) target = $region29
    $region28: #{tpu_custom_call.1} parent=1 // pred_region
      %s577 = ssub.s32 16, 16
      %578 = vsyncadd [#allocation4], %s577
      %s580 = sshll.u32 [#allocation7], 4
      %s581 = int_to_ptr.vmem [resolvable:$true] %s580
      %583 = dma.vmem_to_hbm [thread:$0]  %s581, 16, %s3, [#allocation4]
    $region29: #{tpu_custom_call.1} parent=1 // pred_fallthru
      _
    // Predicated region
    $region30: #{tpu_custom_call.1} parent=1 // pred_check
      _
    $region31: #{tpu_custom_call.1} parent=1 // pred_check_branch
      %585 = sbr.rel (0) target = $region33
    $region32: #{tpu_custom_call.1} parent=1 // pred_region
      %586 = dma.done [#allocation4], 16
    $region33: #{tpu_custom_call.1} parent=1 // pred_fallthru
      _
    %587 = vsyncpa [#allocation3], 1
    %588 = vsyncpa [#allocation6], 1
    %589 = vsyncpa [#allocation4], 1

</llo_original>
